<compile_context>
chip_gen: v5e
topology: v5e:2x2
jax: 0.10.0
libtpu: 0.0.40
codegen_flags: <defaults>
</compile_context>

<pallas_src>
import functools

import jax
import jax.numpy as jnp
from jax.experimental import pallas as pl
from jax.experimental.pallas import tpu as pltpu


def _round_up(x, m):
    return ((x + m - 1) // m) * m


def _f32_to_bf16_bits(x_f32):
    """Round-to-nearest-even f32 -> bf16, returned in the low 16 bits of a uint32.

    Pure 32-bit VPU integer ops. Values here are finite and >= 0 (post-ReLU), so
    NaN / sign corner cases do not matter."""
    bits = pltpu.bitcast(x_f32, jnp.uint32)
    lsb = (bits >> 16) & jnp.uint32(1)
    return (bits + jnp.uint32(0x7FFF) + lsb) >> 16


def _make_kernel(r, low_half_first):
    def kernel(*refs):
        x_refs = refs[:r]
        w1_ref, b1_ref, w2_ref, b2_ref, w3_ref, b3_ref, out_ref = refs[r:]

        # Contracted input rows, channel-major: (r*C, tm); cast f32 -> bf16 in VMEM.
        x_cat = jnp.concatenate(
            [x_refs[j][0].astype(jnp.bfloat16) for j in range(r)], axis=0)

        # conv1: the (1, r) kernel is a single matmul over K = r*C.
        h1 = jnp.dot(w1_ref[...], x_cat, preferred_element_type=jnp.float32)
        h1 = jnp.maximum(h1 + b1_ref[...], 0.0).astype(jnp.bfloat16)      # (64, tm)

        # conv2 (1x1)
        h2 = jnp.dot(w2_ref[...], h1, preferred_element_type=jnp.float32)
        h2 = jnp.maximum(h2 + b2_ref[...], 0.0).astype(jnp.bfloat16)      # (128, tm)

        # conv3 (1x1) on the two 64-channel halves: even / odd output points.
        even = jnp.dot(w3_ref[...], h2[:64, :], preferred_element_type=jnp.float32)
        even = jnp.maximum(even + b3_ref[...], 0.0)                       # (64, tm)
        odd = jnp.dot(w3_ref[...], h2[64:, :], preferred_element_type=jnp.float32)
        odd = jnp.maximum(odd + b3_ref[...], 0.0)                         # (64, tm)

        # Pack (even, odd) bf16 pair of point l into one uint32 lane: the uint32
        # (B,64,L) output then bit-casts for free to bf16 (B,64,2L) with the exact
        # even/odd interleave required -- the output transpose is fused away.
        lo, hi = (even, odd) if low_half_first else (odd, even)
        out_ref[0] = _f32_to_bf16_bits(lo) | (_f32_to_bf16_bits(hi) << 16)

    return kernel


def _choose_tile(l_pad, batch, tile_lanes, min_steps=8):
    """Largest multiple-of-128 tile that divides L_pad, fits `tile_lanes`, and keeps
    at least `min_steps` grid steps (2 TensorCores x ~4 pipeline stages on v7x)."""
    limit = max(128, min(tile_lanes, l_pad))
    cands = [t for t in range(128, limit + 1, 128) if l_pad % t == 0]
    good = [t for t in cands if batch * (l_pad // t) >= min_steps]
    if good:
        return max(good)
    return min(cands)  # tiny problem: maximize grid steps instead


@functools.lru_cache(maxsize=None)
def _bitcast_low_half_first():
    """Does XLA's width-changing bitcast put the low 16 bits at minor index 0?"""
    probe = jax.lax.bitcast_convert_type(
        jnp.array([0x00020001], dtype=jnp.uint32), jnp.uint16)  # shape (1, 2)
    return int(jax.device_get(probe)[0, 0]) == 1


def contract_expand_forward(inputs, params, up_ratio, *,
                            tile_lanes=2048, out_dtype=jnp.bfloat16):
    """inputs: (B, C, N) float32 (PyTorch layout). Returns (B, 64, 2*(N//up_ratio))."""
    w1f, b1, w2t, b2, w3t, b3 = params
    B, C, N = inputs.shape
    r = up_ratio
    assert N % r == 0
    L = N // r
    assert (L * 128) % (r * 64) == 0, "PyTorch view in forward requires r | 2L"
    rc = r * C
    assert w1f.shape == (rc, 64) and w2t.shape == (64, 128) and w3t.shape == (64, 64)

    # Pad L to a lane-friendly multiple of 128 (no-op for typical sizes); the kernel
    # reads the raw (B, C, r*L_pad) tensor directly -- no gathered X written to HBM.
    L_pad = _round_up(L, 128)
    if L_pad != L:
        x_in = jnp.pad(inputs.reshape(B, C, r, L),
                       ((0, 0), (0, 0), (0, 0), (0, L_pad - L)))
        x_in = x_in.reshape(B, C, r * L_pad)
    else:
        x_in = inputs

    tm = _choose_tile(L_pad, B, tile_lanes)
    nl = L_pad // tm

    # Channel-major weights / biases for the kernel (tiny one-off casts).
    w1T = jnp.transpose(w1f).astype(jnp.bfloat16)        # (64, r*C)
    w2T = jnp.transpose(w2t).astype(jnp.bfloat16)        # (128, 64)
    w3T = jnp.transpose(w3t).astype(jnp.bfloat16)        # (64, 64)
    b1c = jnp.reshape(b1, (64, 1)).astype(jnp.float32)
    b2c = jnp.reshape(b2, (128, 1)).astype(jnp.float32)
    b3c = jnp.reshape(b3, (64, 1)).astype(jnp.float32)

    cmap = lambda b, i: (0, 0)
    in_specs = [
        # r strided views of the raw input: slab j covers N-offsets [j*L_pad, (j+1)*L_pad).
        pl.BlockSpec((1, C, tm), lambda b, i, j=j, nl=nl: (b, 0, j * nl + i))
        for j in range(r)
    ] + [
        pl.BlockSpec(w1T.shape, cmap), pl.BlockSpec(b1c.shape, cmap),
        pl.BlockSpec(w2T.shape, cmap), pl.BlockSpec(b2c.shape, cmap),
        pl.BlockSpec(w3T.shape, cmap), pl.BlockSpec(b3c.shape, cmap),
    ]

    flops = 2 * B * L_pad * (rc * 64 + 64 * 128 + 2 * 64 * 64)
    weight_bytes = ((w1T.size + w2T.size + w3T.size) * 2
                    + (b1c.size + b2c.size + b3c.size) * 4)
    bytes_accessed = B * C * r * L_pad * 4 + B * 64 * L_pad * 4 + weight_bytes
    # Double-buffered per-step footprint + generous headroom, comfortably inside
    # v5e/v6e (128 MiB) and v7x (64 MiB) VMEM while overriding v5e's 16 MiB default.
    vmem_limit = int(min(112 << 20,
                         2 * (r * C * tm * 4 + 64 * tm * 4)
                         + weight_bytes + (24 << 20)))

    out_u32 = pl.pallas_call(
        _make_kernel(r, _bitcast_low_half_first()),
        out_shape=jax.ShapeDtypeStruct((B, 64, L_pad), jnp.uint32),
        grid_spec=pltpu.PrefetchScalarGridSpec(
            num_scalar_prefetch=0,
            grid=(B, nl),
            in_specs=in_specs,
            out_specs=pl.BlockSpec((1, 64, tm), lambda b, i: (b, 0, i)),
        ),
        compiler_params=pltpu.CompilerParams(
            dimension_semantics=("parallel", "parallel"),
            vmem_limit_bytes=vmem_limit),
        cost_estimate=pl.CostEstimate(flops=flops, transcendentals=0,
                                      bytes_accessed=bytes_accessed),
    )(*([x_in] * r), w1T, b1c, w2T, b2c, w3T, b3c)

    # Free bit-level reinterpretation: uint32 (B,64,L) -> bf16 (B,64,L,2) -> (B,64,2L).
    pairs = jax.lax.bitcast_convert_type(out_u32, jnp.uint16)      # (B, 64, L_pad, 2)
    pairs = jax.lax.bitcast_convert_type(pairs, jnp.bfloat16)
    out = pairs.reshape(B, 64, 2 * L_pad)
    if L_pad != L:
        out = out[:, :, :2 * L]
    if out_dtype != jnp.bfloat16:
        out = out.astype(out_dtype)
    return out


def init_params(key, num_input_channels, up_ratio):
    """Synthetic params. conv1's (1, up_ratio) kernel is stored fused/transposed
    as w1f[(j*C + c), o] = W1[o, c, 0, j]; conv2/conv3 1x1 weights as (C_in, C_out)."""
    C, r = num_input_channels, up_ratio
    dims = [(r * C, 64), (64, 128), (64, 64)]
    fan_ins = [C * r, 64, 64]
    params = []
    for i, ((cin, cout), fan_in) in enumerate(zip(dims, fan_ins)):
        kw, kb = jax.random.split(jax.random.fold_in(key, i))
        bound = 1.0 / (fan_in ** 0.5)
        w = jax.random.uniform(kw, (cin, cout), jnp.float32, -bound, bound)
        b = jax.random.uniform(kb, (1, cout), jnp.float32, -bound, bound)
        params += [w, b]
    return tuple(params)


def contract_expand_reference(inputs, params, up_ratio):
    """Pure-JAX f32 reference following the PyTorch forward step by step."""
    w1f, b1, w2t, b2, w3t, b3 = params
    B, C, N = inputs.shape
    r = up_ratio
    L = N // r
    net = inputs.reshape(B, C, r, L).transpose(0, 1, 3, 2)            # (B, C, L, r)
    w1 = w1f.reshape(r, C, 64)                                        # w1[j, c, o]
    h1 = jnp.einsum('bclj,jco->bol', net, w1) + b1.reshape(1, 64, 1)
    h1 = jnp.maximum(h1, 0.0)                                         # (B, 64, L)
    h2 = jnp.einsum('bol,op->bpl', h1, w2t) + b2.reshape(1, 128, 1)
    h2 = jnp.maximum(h2, 0.0)                                         # (B, 128, L)
    t = jnp.transpose(h2, (0, 2, 1)).reshape(B, L, 1, 128)            # permute(0,2,3,1)
    d1 = (L * 128) // (r * 64)
    t = t.reshape(B, d1, r, 64).transpose(0, 3, 1, 2)                 # (B, 64, d1, r)
    h3 = jnp.einsum('bqdi,qo->bodi', t, w3t) + b3.reshape(1, 64, 1, 1)
    h3 = jnp.maximum(h3, 0.0)
    return h3.reshape(B, 64, d1 * r)


if __name__ == "__main__":
    key = jax.random.PRNGKey(0)
    # The module expects 64 input channels; exercise up_ratio = 2 and 4.
    for case_idx, (B, C, UP_RATIO, N) in enumerate([(2, 64, 2, 1024), (2, 64, 4, 1024)]):
        kx, kp = jax.random.split(jax.random.fold_in(key, case_idx))
        inputs = jax.random.normal(kx, (B, C, N), dtype=jnp.float32)
        params = init_params(kp, C, UP_RATIO)

        out = jax.block_until_ready(contract_expand_forward(inputs, params, UP_RATIO))
        ref = contract_expand_reference(inputs, params, UP_RATIO)

        assert out.shape == ref.shape == (B, 64, 2 * (N // UP_RATIO))
        rel_err = jnp.linalg.norm(out.astype(jnp.float32) - ref) / jnp.linalg.norm(ref)
        assert float(rel_err) < 5e-2, (
            f"mismatch vs reference (up_ratio={UP_RATIO}): rel_err={rel_err}")

    print("KERNEL_OK")
</pallas_src>

<mosaic_0001>
module attributes {stable_mosaic.version = 11 : i64} {
  func.func @kernel(%arg0: i32, %arg1: i32, %arg2: memref<1x64x128xf32, #tpu.memory_space<vmem>>, %arg3: memref<1x64x128xf32, #tpu.memory_space<vmem>>, %arg4: memref<64x128xbf16, #tpu.memory_space<vmem>>, %arg5: memref<64x1xf32, #tpu.memory_space<vmem>>, %arg6: memref<128x64xbf16, #tpu.memory_space<vmem>>, %arg7: memref<128x1xf32, #tpu.memory_space<vmem>>, %arg8: memref<64x64xbf16, #tpu.memory_space<vmem>>, %arg9: memref<64x1xf32, #tpu.memory_space<vmem>>, %arg10: memref<1x64x128xi32, #tpu.memory_space<vmem>>) attributes {dimension_semantics = [#tpu.dimension_semantics<parallel>, #tpu.dimension_semantics<parallel>], iteration_bounds = array<i64: 2, 4>, scalar_prefetch = 0 : i64, scratch_operands = 0 : i64, tpu.core_type = #tpu.core_type<tc>, window_params = [{transform_indices = @transform_0, window_bounds = array<i64: 1, 64, 128>}, {transform_indices = @transform_1, window_bounds = array<i64: 1, 64, 128>}, {pipeline_mode = #tpu.pipeline_mode<synchronous>, transform_indices = @transform_2, window_bounds = array<i64: 64, 128>}, {pipeline_mode = #tpu.pipeline_mode<synchronous>, transform_indices = @transform_3, window_bounds = array<i64: 64, 1>}, {pipeline_mode = #tpu.pipeline_mode<synchronous>, transform_indices = @transform_4, window_bounds = array<i64: 128, 64>}, {pipeline_mode = #tpu.pipeline_mode<synchronous>, transform_indices = @transform_5, window_bounds = array<i64: 128, 1>}, {pipeline_mode = #tpu.pipeline_mode<synchronous>, transform_indices = @transform_6, window_bounds = array<i64: 64, 64>}, {pipeline_mode = #tpu.pipeline_mode<synchronous>, transform_indices = @transform_7, window_bounds = array<i64: 64, 1>}, {transform_indices = @transform_8, window_bounds = array<i64: 1, 64, 128>}]} {
    %c0 = arith.constant 0 : index
    %c0_0 = arith.constant 0 : index
    %c0_1 = arith.constant 0 : index
    %0 = vector.load %arg2[%c0, %c0_0, %c0_1] : memref<1x64x128xf32, #tpu.memory_space<vmem>>, vector<1x64x128xf32>
    %1 = vector.shape_cast %0 : vector<1x64x128xf32> to vector<64x128xf32>
    %2 = arith.truncf %1 : vector<64x128xf32> to vector<64x128xbf16>
    %c0_2 = arith.constant 0 : index
    %c0_3 = arith.constant 0 : index
    %c0_4 = arith.constant 0 : index
    %3 = vector.load %arg3[%c0_2, %c0_3, %c0_4] : memref<1x64x128xf32, #tpu.memory_space<vmem>>, vector<1x64x128xf32>
    %4 = vector.shape_cast %3 : vector<1x64x128xf32> to vector<64x128xf32>
    %5 = arith.truncf %4 : vector<64x128xf32> to vector<64x128xbf16>
    %6 = tpu.concatenate %2, %5 in 0 : vector<64x128xbf16>, vector<64x128xbf16> -> vector<128x128xbf16>
    %c0_5 = arith.constant 0 : index
    %c0_6 = arith.constant 0 : index
    %7 = vector.load %arg4[%c0_5, %c0_6] : memref<64x128xbf16, #tpu.memory_space<vmem>>, vector<64x128xbf16>
    %cst = arith.constant dense<0.000000e+00> : vector<64x128xf32>
    %8 = tpu.matmul %7, %6, %cst {dimension_numbers = #tpu.dot_dimension_numbers<[1], [0], [0], [1], [0, 0, 1, 1], [], []>} : vector<64x128xbf16>, vector<128x128xbf16>, vector<64x128xf32> -> vector<64x128xf32>
    %c0_7 = arith.constant 0 : index
    %c0_8 = arith.constant 0 : index
    %9 = vector.load %arg5[%c0_7, %c0_8] : memref<64x1xf32, #tpu.memory_space<vmem>>, vector<64x1xf32>
    %10 = vector.broadcast %9 : vector<64x1xf32> to vector<64x128xf32>
    %11 = arith.addf %8, %10 : vector<64x128xf32>
    %cst_9 = arith.constant 0.000000e+00 : f32
    %12 = vector.broadcast %cst_9 : f32 to vector<64x128xf32>
    %13 = arith.maximumf %11, %12 : vector<64x128xf32>
    %14 = arith.truncf %13 : vector<64x128xf32> to vector<64x128xbf16>
    %c0_10 = arith.constant 0 : index
    %c0_11 = arith.constant 0 : index
    %15 = vector.load %arg6[%c0_10, %c0_11] : memref<128x64xbf16, #tpu.memory_space<vmem>>, vector<128x64xbf16>
    %cst_12 = arith.constant dense<0.000000e+00> : vector<128x128xf32>
    %16 = tpu.matmul %15, %14, %cst_12 {dimension_numbers = #tpu.dot_dimension_numbers<[1], [0], [0], [1], [0, 0, 1, 1], [], []>} : vector<128x64xbf16>, vector<64x128xbf16>, vector<128x128xf32> -> vector<128x128xf32>
    %c0_13 = arith.constant 0 : index
    %c0_14 = arith.constant 0 : index
    %17 = vector.load %arg7[%c0_13, %c0_14] : memref<128x1xf32, #tpu.memory_space<vmem>>, vector<128x1xf32>
    %18 = vector.broadcast %17 : vector<128x1xf32> to vector<128x128xf32>
    %19 = arith.addf %16, %18 : vector<128x128xf32>
    %cst_15 = arith.constant 0.000000e+00 : f32
    %20 = vector.broadcast %cst_15 : f32 to vector<128x128xf32>
    %21 = arith.maximumf %19, %20 : vector<128x128xf32>
    %22 = arith.truncf %21 : vector<128x128xf32> to vector<128x128xbf16>
    %c0_16 = arith.constant 0 : index
    %c0_17 = arith.constant 0 : index
    %23 = vector.load %arg8[%c0_16, %c0_17] : memref<64x64xbf16, #tpu.memory_space<vmem>>, vector<64x64xbf16>
    %24 = vector.extract_strided_slice %22 {offsets = [0, 0], sizes = [64, 128], strides = [1, 1]} : vector<128x128xbf16> to vector<64x128xbf16>
    %cst_18 = arith.constant dense<0.000000e+00> : vector<64x128xf32>
    %25 = tpu.matmul %23, %24, %cst_18 {dimension_numbers = #tpu.dot_dimension_numbers<[1], [0], [0], [1], [0, 0, 1, 1], [], []>} : vector<64x64xbf16>, vector<64x128xbf16>, vector<64x128xf32> -> vector<64x128xf32>
    %c0_19 = arith.constant 0 : index
    %c0_20 = arith.constant 0 : index
    %26 = vector.load %arg9[%c0_19, %c0_20] : memref<64x1xf32, #tpu.memory_space<vmem>>, vector<64x1xf32>
    %27 = vector.broadcast %26 : vector<64x1xf32> to vector<64x128xf32>
    %28 = arith.addf %25, %27 : vector<64x128xf32>
    %cst_21 = arith.constant 0.000000e+00 : f32
    %29 = vector.broadcast %cst_21 : f32 to vector<64x128xf32>
    %30 = arith.maximumf %28, %29 : vector<64x128xf32>
    %c0_22 = arith.constant 0 : index
    %c0_23 = arith.constant 0 : index
    %31 = vector.load %arg8[%c0_22, %c0_23] : memref<64x64xbf16, #tpu.memory_space<vmem>>, vector<64x64xbf16>
    %32 = vector.extract_strided_slice %22 {offsets = [64, 0], sizes = [64, 128], strides = [1, 1]} : vector<128x128xbf16> to vector<64x128xbf16>
    %cst_24 = arith.constant dense<0.000000e+00> : vector<64x128xf32>
    %33 = tpu.matmul %31, %32, %cst_24 {dimension_numbers = #tpu.dot_dimension_numbers<[1], [0], [0], [1], [0, 0, 1, 1], [], []>} : vector<64x64xbf16>, vector<64x128xbf16>, vector<64x128xf32> -> vector<64x128xf32>
    %c0_25 = arith.constant 0 : index
    %c0_26 = arith.constant 0 : index
    %34 = vector.load %arg9[%c0_25, %c0_26] : memref<64x1xf32, #tpu.memory_space<vmem>>, vector<64x1xf32>
    %35 = vector.broadcast %34 : vector<64x1xf32> to vector<64x128xf32>
    %36 = arith.addf %33, %35 : vector<64x128xf32>
    %cst_27 = arith.constant 0.000000e+00 : f32
    %37 = vector.broadcast %cst_27 : f32 to vector<64x128xf32>
    %38 = arith.maximumf %36, %37 : vector<64x128xf32>
    %39 = tpu.bitcast %30 : vector<64x128xf32> -> vector<64x128xi32>
    %c16_i32 = arith.constant 16 : i32
    %40 = vector.broadcast %c16_i32 : i32 to vector<64x128xi32>
    %41 = arith.shrui %39, %40 : vector<64x128xi32>
    %c1_i32 = arith.constant 1 : i32
    %42 = vector.broadcast %c1_i32 : i32 to vector<64x128xi32>
    %43 = arith.andi %41, %42 : vector<64x128xi32>
    %c32767_i32 = arith.constant 32767 : i32
    %44 = vector.broadcast %c32767_i32 : i32 to vector<64x128xi32>
    %45 = arith.addi %39, %44 : vector<64x128xi32>
    %46 = arith.addi %45, %43 : vector<64x128xi32>
    %c16_i32_28 = arith.constant 16 : i32
    %47 = vector.broadcast %c16_i32_28 : i32 to vector<64x128xi32>
    %48 = arith.shrui %46, %47 : vector<64x128xi32>
    %49 = tpu.bitcast %38 : vector<64x128xf32> -> vector<64x128xi32>
    %c16_i32_29 = arith.constant 16 : i32
    %50 = vector.broadcast %c16_i32_29 : i32 to vector<64x128xi32>
    %51 = arith.shrui %49, %50 : vector<64x128xi32>
    %c1_i32_30 = arith.constant 1 : i32
    %52 = vector.broadcast %c1_i32_30 : i32 to vector<64x128xi32>
    %53 = arith.andi %51, %52 : vector<64x128xi32>
    %c32767_i32_31 = arith.constant 32767 : i32
    %54 = vector.broadcast %c32767_i32_31 : i32 to vector<64x128xi32>
    %55 = arith.addi %49, %54 : vector<64x128xi32>
    %56 = arith.addi %55, %53 : vector<64x128xi32>
    %c16_i32_32 = arith.constant 16 : i32
    %57 = vector.broadcast %c16_i32_32 : i32 to vector<64x128xi32>
    %58 = arith.shrui %56, %57 : vector<64x128xi32>
    %c16_i32_33 = arith.constant 16 : i32
    %59 = vector.broadcast %c16_i32_33 : i32 to vector<64x128xi32>
    %60 = arith.shli %58, %59 : vector<64x128xi32>
    %61 = arith.ori %48, %60 : vector<64x128xi32>
    %c0_34 = arith.constant 0 : index
    %c0_35 = arith.constant 0 : index
    %c0_36 = arith.constant 0 : index
    %62 = vector.load %arg10[%c0_34, %c0_35, %c0_36] : memref<1x64x128xi32, #tpu.memory_space<vmem>>, vector<1x64x128xi32>
    %63 = vector.shape_cast %62 : vector<1x64x128xi32> to vector<64x128xi32>
    %64 = vector.shape_cast %61 : vector<64x128xi32> to vector<1x64x128xi32>
    tpu.vector_store %arg10[%c0_34, %c0_35, %c0_36], %64 {strides = array<i32>} : memref<1x64x128xi32, #tpu.memory_space<vmem>>, vector<1x64x128xi32>,
    return
  }
  func.func @transform_0(%arg0: i32, %arg1: i32) -> (i32, i32, i32) {
    %c0_i32 = arith.constant 0 : i32
    %0 = arith.addi %c0_i32, %arg1 : i32
    %c0_i32_0 = arith.constant 0 : i32
    %c0_i32_1 = arith.constant 0 : i32
    return %arg0, %c0_i32_0, %0 : i32, i32, i32
  }
  func.func @transform_1(%arg0: i32, %arg1: i32) -> (i32, i32, i32) {
    %c4_i32 = arith.constant 4 : i32
    %0 = arith.addi %c4_i32, %arg1 : i32
    %c0_i32 = arith.constant 0 : i32
    %c0_i32_0 = arith.constant 0 : i32
    return %arg0, %c0_i32, %0 : i32, i32, i32
  }
  func.func @transform_2(%arg0: i32, %arg1: i32) -> (i32, i32) {
    %c0_i32 = arith.constant 0 : i32
    %c0_i32_0 = arith.constant 0 : i32
    %c0_i32_1 = arith.constant 0 : i32
    return %c0_i32, %c0_i32_0 : i32, i32
  }
  func.func @transform_3(%arg0: i32, %arg1: i32) -> (i32, i32) {
    %c0_i32 = arith.constant 0 : i32
    %c0_i32_0 = arith.constant 0 : i32
    %c0_i32_1 = arith.constant 0 : i32
    return %c0_i32, %c0_i32_0 : i32, i32
  }
  func.func @transform_4(%arg0: i32, %arg1: i32) -> (i32, i32) {
    %c0_i32 = arith.constant 0 : i32
    %c0_i32_0 = arith.constant 0 : i32
    %c0_i32_1 = arith.constant 0 : i32
    return %c0_i32, %c0_i32_0 : i32, i32
  }
  func.func @transform_5(%arg0: i32, %arg1: i32) -> (i32, i32) {
    %c0_i32 = arith.constant 0 : i32
    %c0_i32_0 = arith.constant 0 : i32
    %c0_i32_1 = arith.constant 0 : i32
    return %c0_i32, %c0_i32_0 : i32, i32
  }
  func.func @transform_6(%arg0: i32, %arg1: i32) -> (i32, i32) {
    %c0_i32 = arith.constant 0 : i32
    %c0_i32_0 = arith.constant 0 : i32
    %c0_i32_1 = arith.constant 0 : i32
    return %c0_i32, %c0_i32_0 : i32, i32
  }
  func.func @transform_7(%arg0: i32, %arg1: i32) -> (i32, i32) {
    %c0_i32 = arith.constant 0 : i32
    %c0_i32_0 = arith.constant 0 : i32
    %c0_i32_1 = arith.constant 0 : i32
    return %c0_i32, %c0_i32_0 : i32, i32
  }
  func.func @transform_8(%arg0: i32, %arg1: i32) -> (i32, i32, i32) {
    %c0_i32 = arith.constant 0 : i32
    %c0_i32_0 = arith.constant 0 : i32
    return %arg0, %c0_i32, %arg1 : i32, i32, i32
  }
}

</mosaic_0001>

<llo_original>
// kernel: tpu_custom_call.1
$region0: #{tpu_custom_call.1}
  #allocation0 [shape = 'u32[]', space=smem, size = 0x4, offset = 0x4, fixed_abs, tag = 'smem constant byte address 0x4 - core index']
  #allocation1 [shape = 'u32[72,128]{1,0:T(1,128)}', space=vmem, size = 0x9000, scoped, tag = 'internal scratch']
  %s0 = inlined_call_operand.hbm [shape: f32[2,64,1024], index: 0, kind: input, shape index: {}]
  %s1 = inlined_call_operand.hbm [shape: f32[2,64,1024], index: 1, kind: input, shape index: {}]
  %s2 = inlined_call_operand.vmem [shape: bf16[64,128], index: 2, kind: input, shape index: {}]
  %s3 = inlined_call_operand.vmem [shape: f32[64,1], index: 3, kind: input, shape index: {}]
  %s4 = inlined_call_operand.vmem [shape: bf16[128,64], index: 4, kind: input, shape index: {}]
  %s5 = inlined_call_operand.vmem [shape: f32[128,1], index: 5, kind: input, shape index: {}]
  %s6 = inlined_call_operand.vmem [shape: bf16[64,64], index: 6, kind: input, shape index: {}]
  %s7 = inlined_call_operand.vmem [shape: f32[64,1], index: 7, kind: input, shape index: {}]
  %s8 = inlined_call_operand.hbm [shape: u32[2,64,512], index: 8, kind: output, shape index: {}]
  %s9 = sld [smem:[#allocation0]]
  $region73: #{tpu_custom_call.1} parent=0
    _
  %s11 = ssub.s32 1, %s9
  %s12 = scalar_select 0, %s11, %s9
  $region1: #{tpu_custom_call.1} parent=0
    #allocation2 [shape = 'u8[65536]{0}', space=vmem, size = 0x10000, scoped, tag = 'input window, operand 0']
    #allocation3 [shape = 's32[2]{0}', space=sflag, size = 0x8, scoped, tag = 'scoped memory for tpu_custom_call.1']
    #allocation4 [shape = 's32[2]{0}', space=sflag, size = 0x8, scoped, tag = 'scoped memory for tpu_custom_call.1']
    #allocation5 [shape = 'u8[65536]{0}', space=vmem, size = 0x10000, scoped, tag = 'input window, operand 1']
    #allocation6 [shape = 's32[2]{0}', space=sflag, size = 0x8, scoped, tag = 'scoped memory for tpu_custom_call.1']
    #allocation7 [shape = 'u8[65536]{0}', space=vmem, size = 0x10000, scoped, tag = 'output window, operand 0']
    %13 = vsyncpa [#allocation3], 0
    %s14 = scalar_lea.sflag [#allocation3], 1
    %15 = vsyncpa %s14, 0
    %16 = vsyncpa [#allocation6], 0
    %s17 = scalar_lea.sflag [#allocation6], 1
    %18 = vsyncpa %s17, 0
    %19 = vsyncpa [#allocation4], 0
    %s20 = scalar_lea.sflag [#allocation4], 1
    %21 = vsyncpa %s20, 0
    loop: start=0, step=1, limit=10
    $region2: #{tpu_custom_call.1} parent=1 // loop_pre_header
      _
    $region3: #{tpu_custom_call.1} parent=1 // loop_header
      %s23 = sphi 0, %s27
      %p24 = scmp.ge.s32.totalorder %s23, 10
      %s30 = sphi 0, %s42
      %s31 = sphi 0, %s38
      %s32 = sphi 0, %s30
      %s33 = sphi 0, %s31
      %s34 = sphi 0, %s32
      %s35 = sphi 0, %s33
      %s47 = sphi 0, %s49
      %s50 = sphi 0, %s47
      %s51 = sphi 0, %s50
      %s67 = sphi 0, %s51
      %s77 = sphi 0, %s79
      %s80 = sphi 0, %s77
      %s81 = sphi 0, %s80
      %s97 = sphi 0, %s81
      %s101 = sphi 0, %s101
      %s103 = sphi 0, %s101
      %s104 = sphi 0, %s103
      %s118 = sphi 0, %s104
      %s122 = sphi 0, %s122
      %s124 = sphi 0, %s122
      %s125 = sphi 0, %s124
      %s139 = sphi 0, %s125
      %s143 = sphi 0, %s143
      %s145 = sphi 0, %s143
      %s146 = sphi 0, %s145
      %s160 = sphi 0, %s146
      %s164 = sphi 0, %s164
      %s166 = sphi 0, %s164
      %s167 = sphi 0, %s166
      %s181 = sphi 0, %s167
      %s185 = sphi 0, %s185
      %s187 = sphi 0, %s185
      %s188 = sphi 0, %s187
      %s202 = sphi 0, %s188
      %s206 = sphi 0, %s206
      %s208 = sphi 0, %s206
      %s209 = sphi 0, %s208
      %s223 = sphi 0, %s209
      %s231 = sphi 0, %s233
      %s234 = sphi 0, %s231
      %s235 = sphi 0, %s234
      %s251 = sphi 0, %s235
    $region4: #{tpu_custom_call.1} parent=1 // loop_header_branch
      %26 = sbr.rel (%p24) target = $region8
    $region5: #{tpu_custom_call.1} parent=1 // loop_body
      %s28 = ssub.s32 %s23, 1
      %s29 = ssub.s32 %s23, 2
      %s36 = sadd.s32 1, %s31
      %p37 = scmp.ge.s32.totalorder %s36, 4
      %s38 = scalar_select %p37, 0, %s36
      %s39 = sadd.s32 1, %s30
      %s40 = scalar_select %p37, %s39, %s30
      %p41 = scmp.ge.s32.totalorder %s40, 2
      %s42 = scalar_select %p41, 0, %s40
      %s43 = ssub.s32 %s30, %s42
      %s44 = ssub.s32 %s31, %s38
      %s45 = sor.u32 %s43, %s44
      %p46 = scmp.eq.s32.totalorder %s45, 0
      %s48 = sadd.s32 %s47, 1
      %s49 = scalar_select %p46, %s47, %s48
      %p52 = pneg %p46
      %p53 = scmp.eq.s32.totalorder %s23, 7
      %p54 = por %p52, %p53
      %p55 = scmp.ne.s32.totalorder %s47, %s50
      %p56 = scmp.eq.s32.totalorder %s23, 0
      %p57 = por %p55, %p56
      %p58 = scmp.ne.s32.totalorder %s47, %s50
      %p59 = scmp.eq.s32.totalorder %s28, 7
      %p60 = por %p58, %p59
      %p61 = scmp.ne.s32.totalorder %s50, %s51
      %p62 = scmp.eq.s32.totalorder %s28, 0
      %p63 = por %p61, %p62
      %p64 = scmp.ne.s32.totalorder %s50, %s51
      %p65 = scmp.eq.s32.totalorder %s29, 7
      %p66 = por %p64, %p65
      %p68 = scmp.ne.s32.totalorder %s51, %s67
      %p69 = scmp.eq.s32.totalorder %s29, 0
      %p70 = por %p68, %p69
      %s71 = sadd.s32 %s31, 4
      %s72 = sadd.s32 %s38, 4
      %s73 = ssub.s32 %s30, %s42
      %s74 = ssub.s32 %s71, %s72
      %s75 = sor.u32 %s73, %s74
      %p76 = scmp.eq.s32.totalorder %s75, 0
      %s78 = sadd.s32 %s77, 1
      %s79 = scalar_select %p76, %s77, %s78
      %p82 = pneg %p76
      %p83 = scmp.eq.s32.totalorder %s23, 7
      %p84 = por %p82, %p83
      %p85 = scmp.ne.s32.totalorder %s77, %s80
      %p86 = scmp.eq.s32.totalorder %s23, 0
      %p87 = por %p85, %p86
      %p88 = scmp.ne.s32.totalorder %s77, %s80
      %p89 = scmp.eq.s32.totalorder %s28, 7
      %p90 = por %p88, %p89
      %p91 = scmp.ne.s32.totalorder %s80, %s81
      %p92 = scmp.eq.s32.totalorder %s28, 0
      %p93 = por %p91, %p92
      %p94 = scmp.ne.s32.totalorder %s80, %s81
      %p95 = scmp.eq.s32.totalorder %s29, 7
      %p96 = por %p94, %p95
      %p98 = scmp.ne.s32.totalorder %s81, %s97
      %p99 = scmp.eq.s32.totalorder %s29, 0
      %p100 = por %p98, %p99
      %s102 = sadd.s32 %s101, 1
      %p105 = scmp.eq.s32.totalorder %s23, 7
      %p106 = scmp.ne.s32.totalorder %s101, %s103
      %p107 = scmp.eq.s32.totalorder %s23, 0
      %p108 = por %p106, %p107
      %p109 = scmp.ne.s32.totalorder %s101, %s103
      %p110 = scmp.eq.s32.totalorder %s28, 7
      %p111 = por %p109, %p110
      %p112 = scmp.ne.s32.totalorder %s103, %s104
      %p113 = scmp.eq.s32.totalorder %s28, 0
      %p114 = por %p112, %p113
      %p115 = scmp.ne.s32.totalorder %s103, %s104
      %p116 = scmp.eq.s32.totalorder %s29, 7
      %p117 = por %p115, %p116
      %p119 = scmp.ne.s32.totalorder %s104, %s118
      %p120 = scmp.eq.s32.totalorder %s29, 0
      %p121 = por %p119, %p120
      %s123 = sadd.s32 %s122, 1
      %p126 = scmp.eq.s32.totalorder %s23, 7
      %p127 = scmp.ne.s32.totalorder %s122, %s124
      %p128 = scmp.eq.s32.totalorder %s23, 0
      %p129 = por %p127, %p128
      %p130 = scmp.ne.s32.totalorder %s122, %s124
      %p131 = scmp.eq.s32.totalorder %s28, 7
      %p132 = por %p130, %p131
      %p133 = scmp.ne.s32.totalorder %s124, %s125
      %p134 = scmp.eq.s32.totalorder %s28, 0
      %p135 = por %p133, %p134
      %p136 = scmp.ne.s32.totalorder %s124, %s125
      %p137 = scmp.eq.s32.totalorder %s29, 7
      %p138 = por %p136, %p137
      %p140 = scmp.ne.s32.totalorder %s125, %s139
      %p141 = scmp.eq.s32.totalorder %s29, 0
      %p142 = por %p140, %p141
      %s144 = sadd.s32 %s143, 1
      %p147 = scmp.eq.s32.totalorder %s23, 7
      %p148 = scmp.ne.s32.totalorder %s143, %s145
      %p149 = scmp.eq.s32.totalorder %s23, 0
      %p150 = por %p148, %p149
      %p151 = scmp.ne.s32.totalorder %s143, %s145
      %p152 = scmp.eq.s32.totalorder %s28, 7
      %p153 = por %p151, %p152
      %p154 = scmp.ne.s32.totalorder %s145, %s146
      %p155 = scmp.eq.s32.totalorder %s28, 0
      %p156 = por %p154, %p155
      %p157 = scmp.ne.s32.totalorder %s145, %s146
      %p158 = scmp.eq.s32.totalorder %s29, 7
      %p159 = por %p157, %p158
      %p161 = scmp.ne.s32.totalorder %s146, %s160
      %p162 = scmp.eq.s32.totalorder %s29, 0
      %p163 = por %p161, %p162
      %s165 = sadd.s32 %s164, 1
      %p168 = scmp.eq.s32.totalorder %s23, 7
      %p169 = scmp.ne.s32.totalorder %s164, %s166
      %p170 = scmp.eq.s32.totalorder %s23, 0
      %p171 = por %p169, %p170
      %p172 = scmp.ne.s32.totalorder %s164, %s166
      %p173 = scmp.eq.s32.totalorder %s28, 7
      %p174 = por %p172, %p173
      %p175 = scmp.ne.s32.totalorder %s166, %s167
      %p176 = scmp.eq.s32.totalorder %s28, 0
      %p177 = por %p175, %p176
      %p178 = scmp.ne.s32.totalorder %s166, %s167
      %p179 = scmp.eq.s32.totalorder %s29, 7
      %p180 = por %p178, %p179
      %p182 = scmp.ne.s32.totalorder %s167, %s181
      %p183 = scmp.eq.s32.totalorder %s29, 0
      %p184 = por %p182, %p183
      %s186 = sadd.s32 %s185, 1
      %p189 = scmp.eq.s32.totalorder %s23, 7
      %p190 = scmp.ne.s32.totalorder %s185, %s187
      %p191 = scmp.eq.s32.totalorder %s23, 0
      %p192 = por %p190, %p191
      %p193 = scmp.ne.s32.totalorder %s185, %s187
      %p194 = scmp.eq.s32.totalorder %s28, 7
      %p195 = por %p193, %p194
      %p196 = scmp.ne.s32.totalorder %s187, %s188
      %p197 = scmp.eq.s32.totalorder %s28, 0
      %p198 = por %p196, %p197
      %p199 = scmp.ne.s32.totalorder %s187, %s188
      %p200 = scmp.eq.s32.totalorder %s29, 7
      %p201 = por %p199, %p200
      %p203 = scmp.ne.s32.totalorder %s188, %s202
      %p204 = scmp.eq.s32.totalorder %s29, 0
      %p205 = por %p203, %p204
      %s207 = sadd.s32 %s206, 1
      %p210 = scmp.eq.s32.totalorder %s23, 7
      %p211 = scmp.ne.s32.totalorder %s206, %s208
      %p212 = scmp.eq.s32.totalorder %s23, 0
      %p213 = por %p211, %p212
      %p214 = scmp.ne.s32.totalorder %s206, %s208
      %p215 = scmp.eq.s32.totalorder %s28, 7
      %p216 = por %p214, %p215
      %p217 = scmp.ne.s32.totalorder %s208, %s209
      %p218 = scmp.eq.s32.totalorder %s28, 0
      %p219 = por %p217, %p218
      %p220 = scmp.ne.s32.totalorder %s208, %s209
      %p221 = scmp.eq.s32.totalorder %s29, 7
      %p222 = por %p220, %p221
      %p224 = scmp.ne.s32.totalorder %s209, %s223
      %p225 = scmp.eq.s32.totalorder %s29, 0
      %p226 = por %p224, %p225
      %s227 = ssub.s32 %s30, %s42
      %s228 = ssub.s32 %s31, %s38
      %s229 = sor.u32 %s227, %s228
      %p230 = scmp.eq.s32.totalorder %s229, 0
      %s232 = sadd.s32 %s231, 1
      %s233 = scalar_select %p230, %s231, %s232
      %p236 = pneg %p230
      %p237 = scmp.eq.s32.totalorder %s23, 7
      %p238 = por %p236, %p237
      %p239 = scmp.ne.s32.totalorder %s231, %s234
      %p240 = scmp.eq.s32.totalorder %s23, 0
      %p241 = por %p239, %p240
      %p242 = scmp.ne.s32.totalorder %s231, %s234
      %p243 = scmp.eq.s32.totalorder %s28, 7
      %p244 = por %p242, %p243
      %p245 = scmp.ne.s32.totalorder %s234, %s235
      %p246 = scmp.eq.s32.totalorder %s28, 0
      %p247 = por %p245, %p246
      %p248 = scmp.ne.s32.totalorder %s234, %s235
      %p249 = scmp.eq.s32.totalorder %s29, 7
      %p250 = por %p248, %p249
      %p252 = scmp.ne.s32.totalorder %s235, %s251
      %p253 = scmp.eq.s32.totalorder %s29, 0
      %p254 = por %p252, %p253
      %p255 = scmp.le.s32.totalorder 1, %s23
      %p256 = scmp.lt.s32.totalorder %s23, 9
      %p257 = pnand %p255, %p256
      %p258 = pneg %p257
      // Predicated region
      $region9: #{tpu_custom_call.1} parent=5 // pred_check
        _
      $region10: #{tpu_custom_call.1} parent=5 // pred_check_branch
        %260 = sbr.rel (%p257) target = $region12
      $region11: #{tpu_custom_call.1} parent=5 // pred_region
        %s261 = ssub.s32 %s23, 1
        // Predicated region
        $region13: #{tpu_custom_call.1} parent=11 // pred_check
          %p262 = pneg %p114
        $region14: #{tpu_custom_call.1} parent=11 // pred_check_branch
          %264 = sbr.rel (%p262) target = $region16
        $region15: #{tpu_custom_call.1} parent=11 // pred_region
          _
        $region16: #{tpu_custom_call.1} parent=11 // pred_fallthru
          _
        // Predicated region
        $region17: #{tpu_custom_call.1} parent=11 // pred_check
          %p265 = pneg %p135
        $region18: #{tpu_custom_call.1} parent=11 // pred_check_branch
          %267 = sbr.rel (%p265) target = $region20
        $region19: #{tpu_custom_call.1} parent=11 // pred_region
          _
        $region20: #{tpu_custom_call.1} parent=11 // pred_fallthru
          _
        // Predicated region
        $region21: #{tpu_custom_call.1} parent=11 // pred_check
          %p268 = pneg %p156
        $region22: #{tpu_custom_call.1} parent=11 // pred_check_branch
          %270 = sbr.rel (%p268) target = $region24
        $region23: #{tpu_custom_call.1} parent=11 // pred_region
          _
        $region24: #{tpu_custom_call.1} parent=11 // pred_fallthru
          _
        // Predicated region
        $region25: #{tpu_custom_call.1} parent=11 // pred_check
          %p271 = pneg %p177
        $region26: #{tpu_custom_call.1} parent=11 // pred_check_branch
          %273 = sbr.rel (%p271) target = $region28
        $region27: #{tpu_custom_call.1} parent=11 // pred_region
          _
        $region28: #{tpu_custom_call.1} parent=11 // pred_fallthru
          _
        // Predicated region
        $region29: #{tpu_custom_call.1} parent=11 // pred_check
          %p274 = pneg %p198
        $region30: #{tpu_custom_call.1} parent=11 // pred_check_branch
          %276 = sbr.rel (%p274) target = $region32
        $region31: #{tpu_custom_call.1} parent=11 // pred_region
          _
        $region32: #{tpu_custom_call.1} parent=11 // pred_fallthru
          _
        // Predicated region
        $region33: #{tpu_custom_call.1} parent=11 // pred_check
          %p277 = pneg %p219
        $region34: #{tpu_custom_call.1} parent=11 // pred_check_branch
          %279 = sbr.rel (%p277) target = $region36
        $region35: #{tpu_custom_call.1} parent=11 // pred_region
          _
        $region36: #{tpu_custom_call.1} parent=11 // pred_fallthru
          _
      $region12: #{tpu_custom_call.1} parent=5 // pred_fallthru
        _
      %p280 = scmp.lt.s32.totalorder %s23, 8
      // Predicated region
      $region37: #{tpu_custom_call.1} parent=5 // pred_check
        %p281 = pneg %p280
      $region38: #{tpu_custom_call.1} parent=5 // pred_check_branch
        %283 = sbr.rel (%p281) target = $region40
      $region39: #{tpu_custom_call.1} parent=5 // pred_region
        // Predicated region
        $region41: #{tpu_custom_call.1} parent=39 // pred_check
          %p284 = pneg %p57
        $region42: #{tpu_custom_call.1} parent=39 // pred_check_branch
          %286 = sbr.rel (%p284) target = $region44
        $region43: #{tpu_custom_call.1} parent=39 // pred_region
          %s287 = sand.u32 %s47, 1
          %s288 = scalar_lea.sflag [#allocation3], %s287
          %s289 = sand.u32 %s47, 1
          %s290 = smul.addr %s289, 64
          %s291 = scalar_lea.vmem [#allocation2], %s290
          %293 = vsyncadd %s288, 0
          %s294 = smul.addr %s30, 64
          %s295 = sadd.s32 %s31, %s294
          %s296 = smul.addr %s295, 8
          %s297 = scalar_lea.hbm %s0, %s296
          %s298 = sshll.u32 %s297, 4
          %s299 = int_to_ptr.hbm [resolvable:$true] %s298
          %s300 = sshll.u32 %s291, 4
          %s301 = int_to_ptr.vmem [resolvable:$true] %s300
          %306 = dma.hbm_to_vmem [thread:$0]  %s299, 1024, %s301, %s288, 1024, 128, 8
        $region44: #{tpu_custom_call.1} parent=39 // pred_fallthru
          _
        // Predicated region
        $region45: #{tpu_custom_call.1} parent=39 // pred_check
          %p307 = pneg %p87
        $region46: #{tpu_custom_call.1} parent=39 // pred_check_branch
          %309 = sbr.rel (%p307) target = $region48
        $region47: #{tpu_custom_call.1} parent=39 // pred_region
          %s310 = sand.u32 %s77, 1
          %s311 = scalar_lea.sflag [#allocation6], %s310
          %s312 = sand.u32 %s77, 1
          %s313 = smul.addr %s312, 64
          %s314 = scalar_lea.vmem [#allocation5], %s313
          %s315 = sadd.s32 %s31, 4
          %317 = vsyncadd %s311, 0
          %s318 = smul.addr %s30, 64
          %s319 = sadd.s32 %s315, %s318
          %s320 = smul.addr %s319, 8
          %s321 = scalar_lea.hbm %s1, %s320
          %s322 = sshll.u32 %s321, 4
          %s323 = int_to_ptr.hbm [resolvable:$true] %s322
          %s324 = sshll.u32 %s314, 4
          %s325 = int_to_ptr.vmem [resolvable:$true] %s324
          %330 = dma.hbm_to_vmem [thread:$0]  %s323, 1024, %s325, %s311, 1024, 128, 8
        $region48: #{tpu_custom_call.1} parent=39 // pred_fallthru
          _
      $region40: #{tpu_custom_call.1} parent=5 // pred_fallthru
        _
      %p331 = scmp.le.s32.totalorder 1, %s23
      %p332 = scmp.lt.s32.totalorder %s23, 9
      %p333 = pnand %p331, %p332
      %p334 = pneg %p333
      // Predicated region
      $region49: #{tpu_custom_call.1} parent=5 // pred_check
        _
      $region50: #{tpu_custom_call.1} parent=5 // pred_check_branch
        %336 = sbr.rel (%p333) target = $region52
      $region51: #{tpu_custom_call.1} parent=5 // pred_region
        %s337 = ssub.s32 %s23, 1
        %s338 = sand.u32 %s50, 1
        %s339 = scalar_lea.sflag [#allocation3], %s338
        %s340 = sand.u32 %s50, 1
        %s341 = smul.addr %s340, 64
        %s342 = scalar_lea.vmem [#allocation2], %s341
        // Predicated region
        $region53: #{tpu_custom_call.1} parent=51 // pred_check
          %p343 = pneg %p63
        $region54: #{tpu_custom_call.1} parent=51 // pred_check_branch
          %345 = sbr.rel (%p343) target = $region56
        $region55: #{tpu_custom_call.1} parent=51 // pred_region
          %347 = dma.done %s339, 1024
        $region56: #{tpu_custom_call.1} parent=51 // pred_fallthru
          _
        %s348 = sand.u32 %s80, 1
        %s349 = scalar_lea.sflag [#allocation6], %s348
        %s350 = sand.u32 %s80, 1
        %s351 = smul.addr %s350, 64
        %s352 = scalar_lea.vmem [#allocation5], %s351
        // Predicated region
        $region57: #{tpu_custom_call.1} parent=51 // pred_check
          %p353 = pneg %p93
        $region58: #{tpu_custom_call.1} parent=51 // pred_check_branch
          %355 = sbr.rel (%p353) target = $region60
        $region59: #{tpu_custom_call.1} parent=51 // pred_region
          %357 = dma.done %s349, 1024
        $region60: #{tpu_custom_call.1} parent=51 // pred_fallthru
          _
        %s358 = sand.u32 %s50, 1
        %s359 = scalar_lea.sflag [#allocation3], %s358
        %s360 = sand.u32 %s50, 1
        %s361 = smul.addr %s360, 64
        %s362 = scalar_lea.vmem [#allocation2], %s361
        %p363 = pneg %p63
        %p364 = pneg %p60
        %s365 = sand.u32 %s80, 1
        %s366 = scalar_lea.sflag [#allocation6], %s365
        %s367 = sand.u32 %s80, 1
        %s368 = smul.addr %s367, 64
        %s369 = scalar_lea.vmem [#allocation5], %s368
        %p370 = pneg %p93
        %p371 = pneg %p90
        %p372 = pneg %p114
        %p373 = pneg %p111
        %p374 = pneg %p135
        %p375 = pneg %p132
        %p376 = pneg %p156
        %p377 = pneg %p153
        %p378 = pneg %p177
        %p379 = pneg %p174
        %p380 = pneg %p198
        %p381 = pneg %p195
        %p382 = pneg %p219
        %p383 = pneg %p216
        %p384 = pneg %p247
        %p385 = pneg %p244
        %s386 = sand.u32 %s234, 1
        %s387 = scalar_lea.sflag [#allocation4], %s386
        %s388 = sand.u32 %s234, 1
        %s389 = smul.addr %s388, 64
        %s390 = scalar_lea.vmem [#allocation7], %s389
        %s391 = sadd.s32 %s33, 4
        %v393 = vld [vmem:[%s342] sm:$0xff]
        %v394 = vld [vmem:[%s342 + $0x8] sm:$0xff]
        %v395 = vld [vmem:[%s342 + $0x10] sm:$0xff]
        %v396 = vld [vmem:[%s342 + $0x18] sm:$0xff]
        %v397 = vld [vmem:[%s342 + $0x20] sm:$0xff]
        %v398 = vld [vmem:[%s342 + $0x28] sm:$0xff]
        %v399 = vld [vmem:[%s342 + $0x30] sm:$0xff]
        %v400 = vld [vmem:[%s342 + $0x38] sm:$0xff]
        %v401 = vpack.c.bf16 %v393, %v393
        %v402 = vpack.c.bf16 %v394, %v394
        %v403 = vpack.c.bf16 %v395, %v395
        %v404 = vpack.c.bf16 %v396, %v396
        %v405 = vpack.c.bf16 %v397, %v397
        %v406 = vpack.c.bf16 %v398, %v398
        %v407 = vpack.c.bf16 %v399, %v399
        %v408 = vpack.c.bf16 %v400, %v400
        %v409 = vld [vmem:[%s352] sm:$0xff]
        %v410 = vld [vmem:[%s352 + $0x8] sm:$0xff]
        %v411 = vld [vmem:[%s352 + $0x10] sm:$0xff]
        %v412 = vld [vmem:[%s352 + $0x18] sm:$0xff]
        %v413 = vld [vmem:[%s352 + $0x20] sm:$0xff]
        %v414 = vld [vmem:[%s352 + $0x28] sm:$0xff]
        %v415 = vld [vmem:[%s352 + $0x30] sm:$0xff]
        %v416 = vld [vmem:[%s352 + $0x38] sm:$0xff]
        %v417 = vpack.c.bf16 %v409, %v409
        %v418 = vpack.c.bf16 %v410, %v410
        %v419 = vpack.c.bf16 %v411, %v411
        %v420 = vpack.c.bf16 %v412, %v412
        %v421 = vpack.c.bf16 %v413, %v413
        %v422 = vpack.c.bf16 %v414, %v414
        %v423 = vpack.c.bf16 %v415, %v415
        %v424 = vpack.c.bf16 %v416, %v416
        %v433 = vunpack.c.l.b16 %v401
        %v434 = vunpack.c.l.b16 %v402
        %v435 = vunpack.c.l.b16 %v403
        %v436 = vunpack.c.l.b16 %v404
        %v437 = vunpack.c.l.b16 %v405
        %v438 = vunpack.c.l.b16 %v406
        %v439 = vunpack.c.l.b16 %v407
        %v440 = vunpack.c.l.b16 %v408
        %v441 = vpack.c.b16 %v434, %v433
        %v442 = vpack.c.b16 %v436, %v435
        %v443 = vpack.c.b16 %v438, %v437
        %v444 = vpack.c.b16 %v440, %v439
        %v457 = vunpack.c.l.b16 %v417
        %v458 = vunpack.c.l.b16 %v418
        %v459 = vunpack.c.l.b16 %v419
        %v460 = vunpack.c.l.b16 %v420
        %v461 = vunpack.c.l.b16 %v421
        %v462 = vunpack.c.l.b16 %v422
        %v463 = vunpack.c.l.b16 %v423
        %v464 = vunpack.c.l.b16 %v424
        %v465 = vpack.c.b16 %v458, %v457
        %v466 = vpack.c.b16 %v460, %v459
        %v467 = vpack.c.b16 %v462, %v461
        %v468 = vpack.c.b16 %v464, %v463
        %v473 = vld [vmem:[%s2] sm:$0xf]
        %v474 = vld [vmem:[%s2 + $0x4] sm:$0xf]
        %v475 = vld [vmem:[%s2 + $0x8] sm:$0xf]
        %v476 = vld [vmem:[%s2 + $0xc] sm:$0xf]
        %v477 = vld [vmem:[%s2 + $0x10] sm:$0xf]
        %v478 = vld [vmem:[%s2 + $0x14] sm:$0xf]
        %v479 = vld [vmem:[%s2 + $0x18] sm:$0xf]
        %v480 = vld [vmem:[%s2 + $0x1c] sm:$0xf]
        %v481 = vld [vmem:[%s3] sm:$0xff]
        %v482 = vld [vmem:[%s3 + $0x8] sm:$0xff]
        %v483 = vld [vmem:[%s3 + $0x10] sm:$0xff]
        %v484 = vld [vmem:[%s3 + $0x18] sm:$0xff]
        %v485 = vld [vmem:[%s3 + $0x20] sm:$0xff]
        %v486 = vld [vmem:[%s3 + $0x28] sm:$0xff]
        %v487 = vld [vmem:[%s3 + $0x30] sm:$0xff]
        %v488 = vld [vmem:[%s3 + $0x38] sm:$0xff]
        %490 = vset.pattern.permute.xlu0 0
        %491 = vperm.xlu0 %490, %v481
        %v492 = vpop.permute.xlu0 %491
        %495 = vset.pattern.permute.xlu0 0
        %496 = vperm.xlu0 %495, %v482
        %v497 = vpop.permute.xlu0 %496
        %500 = vset.pattern.permute.xlu0 0
        %501 = vperm.xlu0 %500, %v483
        %v502 = vpop.permute.xlu0 %501
        %505 = vset.pattern.permute.xlu0 0
        %506 = vperm.xlu0 %505, %v484
        %v507 = vpop.permute.xlu0 %506
        %510 = vset.pattern.permute.xlu0 0
        %511 = vperm.xlu0 %510, %v485
        %v512 = vpop.permute.xlu0 %511
        %515 = vset.pattern.permute.xlu0 0
        %516 = vperm.xlu0 %515, %v486
        %v517 = vpop.permute.xlu0 %516
        %520 = vset.pattern.permute.xlu0 0
        %521 = vperm.xlu0 %520, %v487
        %v522 = vpop.permute.xlu0 %521
        %525 = vset.pattern.permute.xlu0 0
        %526 = vperm.xlu0 %525, %v488
        %v527 = vpop.permute.xlu0 %526
        %v537 = vunpack.c.l.b16 %v473
        %v538 = vunpack.c.l.b16 %v474
        %v539 = vunpack.c.l.b16 %v475
        %v540 = vunpack.c.l.b16 %v476
        %v541 = vunpack.c.l.b16 %v477
        %v542 = vunpack.c.l.b16 %v478
        %v543 = vunpack.c.l.b16 %v479
        %v544 = vunpack.c.l.b16 %v480
        %v545 = vpack.c.b16 %v538, %v537
        %v546 = vpack.c.b16 %v540, %v539
        %v547 = vpack.c.b16 %v542, %v541
        %v548 = vpack.c.b16 %v544, %v543
        %553 = vmatpush.bf16.msra.mxu0 %v468
        %554 = vmatpush.bf16.msra.mxu0 %v467
        %555 = vmatpush.bf16.msra.mxu0 %v466
        %556 = vmatpush.bf16.msra.mxu0 %v465
        %557 = vmatpush.bf16.msra.mxu0 %v444
        %558 = vmatpush.bf16.msra.mxu0 %v443
        %559 = vmatpush.bf16.msra.mxu0 %v442
        %560 = vmatpush.bf16.msra.mxu0 %v441
        %561 = vmatmul.bf16.gmra.mxu0 %v545
        %v562 = vpop.f32.mrf.mxu0
        %v563 = vadd.f32 %v492, %v562
        %v564 = vpop.f32.mrf.mxu0
        %v565 = vadd.f32 %v497, %v564
        %566 = vmatmul.bf16.gmra.mxu0 %v546
        %v567 = vpop.f32.mrf.mxu0
        %v568 = vadd.f32 %v502, %v567
        %v569 = vpop.f32.mrf.mxu0
        %v570 = vadd.f32 %v507, %v569
        %571 = vmatmul.bf16.gmra.mxu0 %v547
        %v572 = vpop.f32.mrf.mxu0
        %v573 = vadd.f32 %v512, %v572
        %v574 = vpop.f32.mrf.mxu0
        %v575 = vadd.f32 %v517, %v574
        %576 = vmatmul.bf16.gmra.mxu0 %v548
        %v577 = vpop.f32.mrf.mxu0
        %v578 = vadd.f32 %v522, %v577
        %v579 = vpop.f32.mrf.mxu0
        %v580 = vadd.f32 %v527, %v579
        %581 = vdwg.mxu0
        %v582 = vmax.f32 %v563, 0.0
        %v583 = vmax.f32 %v565, 0.0
        %v584 = vmax.f32 %v568, 0.0
        %v585 = vmax.f32 %v570, 0.0
        %v586 = vmax.f32 %v573, 0.0
        %v587 = vmax.f32 %v575, 0.0
        %v588 = vmax.f32 %v578, 0.0
        %v589 = vmax.f32 %v580, 0.0
        %v590 = vpack.c.bf16 %v583, %v582
        %v591 = vpack.c.bf16 %v585, %v584
        %v592 = vpack.c.bf16 %v587, %v586
        %v593 = vpack.c.bf16 %v589, %v588
        %v594 = vld [vmem:[%s4] sm:$0xf]
        %v595 = vld [vmem:[%s4 + $0x4] sm:$0xf]
        %v596 = vld [vmem:[%s4 + $0x8] sm:$0xf]
        %v597 = vld [vmem:[%s4 + $0xc] sm:$0xf]
        %v598 = vld [vmem:[%s4 + $0x10] sm:$0xf]
        %v599 = vld [vmem:[%s4 + $0x14] sm:$0xf]
        %v600 = vld [vmem:[%s4 + $0x18] sm:$0xf]
        %v601 = vld [vmem:[%s4 + $0x1c] sm:$0xf]
        %v602 = vld [vmem:[%s4 + $0x20] sm:$0xf]
        %v603 = vld [vmem:[%s4 + $0x24] sm:$0xf]
        %v604 = vld [vmem:[%s4 + $0x28] sm:$0xf]
        %v605 = vld [vmem:[%s4 + $0x2c] sm:$0xf]
        %v606 = vld [vmem:[%s4 + $0x30] sm:$0xf]
        %v607 = vld [vmem:[%s4 + $0x34] sm:$0xf]
        %v608 = vld [vmem:[%s4 + $0x38] sm:$0xf]
        %v609 = vld [vmem:[%s4 + $0x3c] sm:$0xf]
        %v610 = vld [vmem:[%s5] sm:$0xff]
        %v611 = vld [vmem:[%s5 + $0x8] sm:$0xff]
        %v612 = vld [vmem:[%s5 + $0x10] sm:$0xff]
        %v613 = vld [vmem:[%s5 + $0x18] sm:$0xff]
        %v614 = vld [vmem:[%s5 + $0x20] sm:$0xff]
        %v615 = vld [vmem:[%s5 + $0x28] sm:$0xff]
        %v616 = vld [vmem:[%s5 + $0x30] sm:$0xff]
        %v617 = vld [vmem:[%s5 + $0x38] sm:$0xff]
        %v618 = vld [vmem:[%s5 + $0x40] sm:$0xff]
        %v619 = vld [vmem:[%s5 + $0x48] sm:$0xff]
        %v620 = vld [vmem:[%s5 + $0x50] sm:$0xff]
        %v621 = vld [vmem:[%s5 + $0x58] sm:$0xff]
        %v622 = vld [vmem:[%s5 + $0x60] sm:$0xff]
        %v623 = vld [vmem:[%s5 + $0x68] sm:$0xff]
        %v624 = vld [vmem:[%s5 + $0x70] sm:$0xff]
        %v625 = vld [vmem:[%s5 + $0x78] sm:$0xff]
        %627 = vset.pattern.permute.xlu0 0
        %628 = vperm.xlu0 %627, %v610
        %v629 = vpop.permute.xlu0 %628
        %632 = vset.pattern.permute.xlu0 0
        %633 = vperm.xlu0 %632, %v611
        %v634 = vpop.permute.xlu0 %633
        %637 = vset.pattern.permute.xlu0 0
        %638 = vperm.xlu0 %637, %v612
        %v639 = vpop.permute.xlu0 %638
        %642 = vset.pattern.permute.xlu0 0
        %643 = vperm.xlu0 %642, %v613
        %v644 = vpop.permute.xlu0 %643
        %647 = vset.pattern.permute.xlu0 0
        %648 = vperm.xlu0 %647, %v614
        %v649 = vpop.permute.xlu0 %648
        %652 = vset.pattern.permute.xlu0 0
        %653 = vperm.xlu0 %652, %v615
        %v654 = vpop.permute.xlu0 %653
        %657 = vset.pattern.permute.xlu0 0
        %658 = vperm.xlu0 %657, %v616
        %v659 = vpop.permute.xlu0 %658
        %662 = vset.pattern.permute.xlu0 0
        %663 = vperm.xlu0 %662, %v617
        %v664 = vpop.permute.xlu0 %663
        %667 = vset.pattern.permute.xlu0 0
        %668 = vperm.xlu0 %667, %v618
        %v669 = vpop.permute.xlu0 %668
        %672 = vset.pattern.permute.xlu0 0
        %673 = vperm.xlu0 %672, %v619
        %v674 = vpop.permute.xlu0 %673
        %677 = vset.pattern.permute.xlu0 0
        %678 = vperm.xlu0 %677, %v620
        %v679 = vpop.permute.xlu0 %678
        %682 = vset.pattern.permute.xlu0 0
        %683 = vperm.xlu0 %682, %v621
        %v684 = vpop.permute.xlu0 %683
        %687 = vset.pattern.permute.xlu0 0
        %688 = vperm.xlu0 %687, %v622
        %v689 = vpop.permute.xlu0 %688
        %692 = vset.pattern.permute.xlu0 0
        %693 = vperm.xlu0 %692, %v623
        %v694 = vpop.permute.xlu0 %693
        %697 = vset.pattern.permute.xlu0 0
        %698 = vperm.xlu0 %697, %v624
        %v699 = vpop.permute.xlu0 %698
        %702 = vset.pattern.permute.xlu0 0
        %703 = vperm.xlu0 %702, %v625
        %v704 = vpop.permute.xlu0 %703
        %v722 = vunpack.c.l.b16 %v594
        %v723 = vunpack.c.l.b16 %v595
        %v724 = vunpack.c.l.b16 %v596
        %v725 = vunpack.c.l.b16 %v597
        %v726 = vunpack.c.l.b16 %v598
        %v727 = vunpack.c.l.b16 %v599
        %v728 = vunpack.c.l.b16 %v600
        %v729 = vunpack.c.l.b16 %v601
        %v730 = vunpack.c.l.b16 %v602
        %v731 = vunpack.c.l.b16 %v603
        %v732 = vunpack.c.l.b16 %v604
        %v733 = vunpack.c.l.b16 %v605
        %v734 = vunpack.c.l.b16 %v606
        %v735 = vunpack.c.l.b16 %v607
        %v736 = vunpack.c.l.b16 %v608
        %v737 = vunpack.c.l.b16 %v609
        %v738 = vpack.c.b16 %v723, %v722
        %v739 = vpack.c.b16 %v725, %v724
        %v740 = vpack.c.b16 %v727, %v726
        %v741 = vpack.c.b16 %v729, %v728
        %v742 = vpack.c.b16 %v731, %v730
        %v743 = vpack.c.b16 %v733, %v732
        %v744 = vpack.c.b16 %v735, %v734
        %v745 = vpack.c.b16 %v737, %v736
        %vm746 = vcmask 523264
        %v748 = vsel %vm746, %v738, 0
        %v751 = vsel %vm746, %v739, 0
        %v754 = vsel %vm746, %v740, 0
        %v757 = vsel %vm746, %v741, 0
        %v760 = vsel %vm746, %v742, 0
        %v763 = vsel %vm746, %v743, 0
        %v766 = vsel %vm746, %v744, 0
        %v769 = vsel %vm746, %v745, 0
        %771 = vmatpush.bf16.msra.mxu0 0
        %772 = vmatpush.bf16.msra.mxu0 0
        %773 = vmatpush.bf16.msra.mxu0 0
        %774 = vmatpush.bf16.msra.mxu0 0
        %775 = vmatpush.bf16.msra.mxu0 %v593
        %776 = vmatpush.bf16.msra.mxu0 %v592
        %777 = vmatpush.bf16.msra.mxu0 %v591
        %778 = vmatpush.bf16.msra.mxu0 %v590
        %779 = vmatmul.bf16.gmra.mxu0 %v748
        %v780 = vpop.f32.mrf.mxu0
        %v781 = vadd.f32 %v629, %v780
        %v782 = vpop.f32.mrf.mxu0
        %v783 = vadd.f32 %v634, %v782
        %784 = vmatmul.bf16.gmra.mxu0 %v751
        %v785 = vpop.f32.mrf.mxu0
        %v786 = vadd.f32 %v639, %v785
        %v787 = vpop.f32.mrf.mxu0
        %v788 = vadd.f32 %v644, %v787
        %789 = vmatmul.bf16.gmra.mxu0 %v754
        %v790 = vpop.f32.mrf.mxu0
        %v791 = vadd.f32 %v649, %v790
        %v792 = vpop.f32.mrf.mxu0
        %v793 = vadd.f32 %v654, %v792
        %794 = vmatmul.bf16.gmra.mxu0 %v757
        %v795 = vpop.f32.mrf.mxu0
        %v796 = vadd.f32 %v659, %v795
        %v797 = vpop.f32.mrf.mxu0
        %v798 = vadd.f32 %v664, %v797
        %799 = vmatmul.bf16.gmra.mxu0 %v760
        %v800 = vpop.f32.mrf.mxu0
        %v801 = vadd.f32 %v669, %v800
        %v802 = vpop.f32.mrf.mxu0
        %v803 = vadd.f32 %v674, %v802
        %804 = vmatmul.bf16.gmra.mxu0 %v763
        %v805 = vpop.f32.mrf.mxu0
        %v806 = vadd.f32 %v679, %v805
        %v807 = vpop.f32.mrf.mxu0
        %v808 = vadd.f32 %v684, %v807
        %809 = vmatmul.bf16.gmra.mxu0 %v766
        %v810 = vpop.f32.mrf.mxu0
        %v811 = vadd.f32 %v689, %v810
        %v812 = vpop.f32.mrf.mxu0
        %v813 = vadd.f32 %v694, %v812
        %814 = vmatmul.bf16.gmra.mxu0 %v769
        %v815 = vpop.f32.mrf.mxu0
        %v816 = vadd.f32 %v699, %v815
        %v817 = vpop.f32.mrf.mxu0
        %v818 = vadd.f32 %v704, %v817
        %819 = vdwg.mxu0
        %v820 = vmax.f32 %v781, 0.0
        %v821 = vmax.f32 %v783, 0.0
        %v822 = vmax.f32 %v786, 0.0
        %v823 = vmax.f32 %v788, 0.0
        %v824 = vmax.f32 %v791, 0.0
        %v825 = vmax.f32 %v793, 0.0
        %v826 = vmax.f32 %v796, 0.0
        %v827 = vmax.f32 %v798, 0.0
        %v828 = vmax.f32 %v801, 0.0
        %v829 = vmax.f32 %v803, 0.0
        %v830 = vmax.f32 %v806, 0.0
        %v831 = vmax.f32 %v808, 0.0
        %v832 = vmax.f32 %v811, 0.0
        %v833 = vmax.f32 %v813, 0.0
        %v834 = vmax.f32 %v816, 0.0
        %v835 = vmax.f32 %v818, 0.0
        %v836 = vpack.c.bf16 %v820, %v820
        %v837 = vpack.c.bf16 %v821, %v821
        %v838 = vpack.c.bf16 %v822, %v822
        %v839 = vpack.c.bf16 %v823, %v823
        %v840 = vpack.c.bf16 %v824, %v824
        %v841 = vpack.c.bf16 %v825, %v825
        %v842 = vpack.c.bf16 %v826, %v826
        %v843 = vpack.c.bf16 %v827, %v827
        %v844 = vpack.c.bf16 %v828, %v828
        %v845 = vpack.c.bf16 %v829, %v829
        %v846 = vpack.c.bf16 %v830, %v830
        %v847 = vpack.c.bf16 %v831, %v831
        %v848 = vpack.c.bf16 %v832, %v832
        %v849 = vpack.c.bf16 %v833, %v833
        %v850 = vpack.c.bf16 %v834, %v834
        %v851 = vpack.c.bf16 %v835, %v835
        %v852 = vld [vmem:[%s6] sm:$0xf]
        %v853 = vld [vmem:[%s6 + $0x4] sm:$0xf]
        %v854 = vld [vmem:[%s6 + $0x8] sm:$0xf]
        %v855 = vld [vmem:[%s6 + $0xc] sm:$0xf]
        %v856 = vld [vmem:[%s6 + $0x10] sm:$0xf]
        %v857 = vld [vmem:[%s6 + $0x14] sm:$0xf]
        %v858 = vld [vmem:[%s6 + $0x18] sm:$0xf]
        %v859 = vld [vmem:[%s6 + $0x1c] sm:$0xf]
        %v860 = vld [vmem:[%s7] sm:$0xff]
        %v861 = vld [vmem:[%s7 + $0x8] sm:$0xff]
        %v862 = vld [vmem:[%s7 + $0x10] sm:$0xff]
        %v863 = vld [vmem:[%s7 + $0x18] sm:$0xff]
        %v864 = vld [vmem:[%s7 + $0x20] sm:$0xff]
        %v865 = vld [vmem:[%s7 + $0x28] sm:$0xff]
        %v866 = vld [vmem:[%s7 + $0x30] sm:$0xff]
        %v867 = vld [vmem:[%s7 + $0x38] sm:$0xff]
        %869 = vset.pattern.permute.xlu0 0
        %870 = vperm.xlu0 %869, %v860
        %v871 = vpop.permute.xlu0 %870
        %874 = vset.pattern.permute.xlu0 0
        %875 = vperm.xlu0 %874, %v861
        %v876 = vpop.permute.xlu0 %875
        %879 = vset.pattern.permute.xlu0 0
        %880 = vperm.xlu0 %879, %v862
        %v881 = vpop.permute.xlu0 %880
        %884 = vset.pattern.permute.xlu0 0
        %885 = vperm.xlu0 %884, %v863
        %v886 = vpop.permute.xlu0 %885
        %889 = vset.pattern.permute.xlu0 0
        %890 = vperm.xlu0 %889, %v864
        %v891 = vpop.permute.xlu0 %890
        %894 = vset.pattern.permute.xlu0 0
        %895 = vperm.xlu0 %894, %v865
        %v896 = vpop.permute.xlu0 %895
        %899 = vset.pattern.permute.xlu0 0
        %900 = vperm.xlu0 %899, %v866
        %v901 = vpop.permute.xlu0 %900
        %904 = vset.pattern.permute.xlu0 0
        %905 = vperm.xlu0 %904, %v867
        %v906 = vpop.permute.xlu0 %905
        %v916 = vunpack.c.l.b16 %v852
        %v917 = vunpack.c.l.b16 %v853
        %v918 = vunpack.c.l.b16 %v854
        %v919 = vunpack.c.l.b16 %v855
        %v920 = vunpack.c.l.b16 %v856
        %v921 = vunpack.c.l.b16 %v857
        %v922 = vunpack.c.l.b16 %v858
        %v923 = vunpack.c.l.b16 %v859
        %v924 = vpack.c.b16 %v917, %v916
        %v925 = vpack.c.b16 %v919, %v918
        %v926 = vpack.c.b16 %v921, %v920
        %v927 = vpack.c.b16 %v923, %v922
        %v936 = vunpack.c.l.b16 %v836
        %v937 = vunpack.c.l.b16 %v837
        %v938 = vunpack.c.l.b16 %v838
        %v939 = vunpack.c.l.b16 %v839
        %v940 = vunpack.c.l.b16 %v840
        %v941 = vunpack.c.l.b16 %v841
        %v942 = vunpack.c.l.b16 %v842
        %v943 = vunpack.c.l.b16 %v843
        %v944 = vpack.c.b16 %v937, %v936
        %v945 = vpack.c.b16 %v939, %v938
        %v946 = vpack.c.b16 %v941, %v940
        %v947 = vpack.c.b16 %v943, %v942
        %v953 = vsel %vm746, %v924, 0
        %v956 = vsel %vm746, %v925, 0
        %v959 = vsel %vm746, %v926, 0
        %v962 = vsel %vm746, %v927, 0
        %964 = vmatpush.bf16.msra.mxu0 0
        %965 = vmatpush.bf16.msra.mxu0 0
        %966 = vmatpush.bf16.msra.mxu0 0
        %967 = vmatpush.bf16.msra.mxu0 0
        %968 = vmatpush.bf16.msra.mxu0 %v947
        %969 = vmatpush.bf16.msra.mxu0 %v946
        %970 = vmatpush.bf16.msra.mxu0 %v945
        %971 = vmatpush.bf16.msra.mxu0 %v944
        %972 = vmatmul.bf16.gmra.mxu0 %v953
        %v973 = vpop.f32.mrf.mxu0
        %v974 = vadd.f32 %v871, %v973
        %v975 = vpop.f32.mrf.mxu0
        %v976 = vadd.f32 %v876, %v975
        %977 = vmatmul.bf16.gmra.mxu0 %v956
        %v978 = vpop.f32.mrf.mxu0
        %v979 = vadd.f32 %v881, %v978
        %v980 = vpop.f32.mrf.mxu0
        %v981 = vadd.f32 %v886, %v980
        %982 = vmatmul.bf16.gmra.mxu0 %v959
        %v983 = vpop.f32.mrf.mxu0
        %v984 = vadd.f32 %v891, %v983
        %v985 = vpop.f32.mrf.mxu0
        %v986 = vadd.f32 %v896, %v985
        %987 = vmatmul.bf16.gmra.mxu0 %v962
        %v988 = vpop.f32.mrf.mxu0
        %v989 = vadd.f32 %v901, %v988
        %v990 = vpop.f32.mrf.mxu0
        %v991 = vadd.f32 %v906, %v990
        %992 = vdwg.mxu0
        %v993 = vmax.f32 %v974, 0.0
        %v994 = vmax.f32 %v976, 0.0
        %v995 = vmax.f32 %v979, 0.0
        %v996 = vmax.f32 %v981, 0.0
        %v997 = vmax.f32 %v984, 0.0
        %v998 = vmax.f32 %v986, 0.0
        %v999 = vmax.f32 %v989, 0.0
        %v1000 = vmax.f32 %v991, 0.0
        %v1009 = vunpack.c.l.b16 %v844
        %v1010 = vunpack.c.l.b16 %v845
        %v1011 = vunpack.c.l.b16 %v846
        %v1012 = vunpack.c.l.b16 %v847
        %v1013 = vunpack.c.l.b16 %v848
        %v1014 = vunpack.c.l.b16 %v849
        %v1015 = vunpack.c.l.b16 %v850
        %v1016 = vunpack.c.l.b16 %v851
        %v1017 = vpack.c.b16 %v1010, %v1009
        %v1018 = vpack.c.b16 %v1012, %v1011
        %v1019 = vpack.c.b16 %v1014, %v1013
        %v1020 = vpack.c.b16 %v1016, %v1015
        %1025 = vmatpush.bf16.msra.mxu0 0
        %1026 = vmatpush.bf16.msra.mxu0 0
        %1027 = vmatpush.bf16.msra.mxu0 0
        %1028 = vmatpush.bf16.msra.mxu0 0
        %1029 = vmatpush.bf16.msra.mxu0 %v1020
        %1030 = vmatpush.bf16.msra.mxu0 %v1019
        %1031 = vmatpush.bf16.msra.mxu0 %v1018
        %1032 = vmatpush.bf16.msra.mxu0 %v1017
        %1033 = vmatmul.bf16.gmra.mxu0 %v953
        %v1034 = vpop.f32.mrf.mxu0
        %v1035 = vadd.f32 %v871, %v1034
        %v1036 = vpop.f32.mrf.mxu0
        %v1037 = vadd.f32 %v876, %v1036
        %1038 = vmatmul.bf16.gmra.mxu0 %v956
        %v1039 = vpop.f32.mrf.mxu0
        %v1040 = vadd.f32 %v881, %v1039
        %v1041 = vpop.f32.mrf.mxu0
        %v1042 = vadd.f32 %v886, %v1041
        %1043 = vmatmul.bf16.gmra.mxu0 %v959
        %v1044 = vpop.f32.mrf.mxu0
        %v1045 = vadd.f32 %v891, %v1044
        %v1046 = vpop.f32.mrf.mxu0
        %v1047 = vadd.f32 %v896, %v1046
        %1048 = vmatmul.bf16.gmra.mxu0 %v962
        %v1049 = vpop.f32.mrf.mxu0
        %v1050 = vadd.f32 %v901, %v1049
        %v1051 = vpop.f32.mrf.mxu0
        %v1052 = vadd.f32 %v906, %v1051
        %1053 = vdwg.mxu0
        %v1054 = vmax.f32 %v1035, 0.0
        %v1055 = vmax.f32 %v1037, 0.0
        %v1056 = vmax.f32 %v1040, 0.0
        %v1057 = vmax.f32 %v1042, 0.0
        %v1058 = vmax.f32 %v1045, 0.0
        %v1059 = vmax.f32 %v1047, 0.0
        %v1060 = vmax.f32 %v1050, 0.0
        %v1061 = vmax.f32 %v1052, 0.0
        %v1070 = vshrl.u32 %v993, 16
        %v1071 = vshrl.u32 %v994, 16
        %v1072 = vshrl.u32 %v995, 16
        %v1073 = vshrl.u32 %v996, 16
        %v1074 = vshrl.u32 %v997, 16
        %v1075 = vshrl.u32 %v998, 16
        %v1076 = vshrl.u32 %v999, 16
        %v1077 = vshrl.u32 %v1000, 16
        %v1078 = vand.u32 %v1070, 1
        %v1079 = vand.u32 %v1071, 1
        %v1080 = vand.u32 %v1072, 1
        %v1081 = vand.u32 %v1073, 1
        %v1082 = vand.u32 %v1074, 1
        %v1083 = vand.u32 %v1075, 1
        %v1084 = vand.u32 %v1076, 1
        %v1085 = vand.u32 %v1077, 1
        %v1086 = vadd.s32 %v993, 32767
        %v1087 = vadd.s32 %v994, 32767
        %v1088 = vadd.s32 %v995, 32767
        %v1089 = vadd.s32 %v996, 32767
        %v1090 = vadd.s32 %v997, 32767
        %v1091 = vadd.s32 %v998, 32767
        %v1092 = vadd.s32 %v999, 32767
        %v1093 = vadd.s32 %v1000, 32767
        %v1094 = vadd.s32 %v1086, %v1078
        %v1095 = vadd.s32 %v1087, %v1079
        %v1096 = vadd.s32 %v1088, %v1080
        %v1097 = vadd.s32 %v1089, %v1081
        %v1098 = vadd.s32 %v1090, %v1082
        %v1099 = vadd.s32 %v1091, %v1083
        %v1100 = vadd.s32 %v1092, %v1084
        %v1101 = vadd.s32 %v1093, %v1085
        %v1102 = vshrl.u32 %v1094, 16
        %v1103 = vshrl.u32 %v1095, 16
        %v1104 = vshrl.u32 %v1096, 16
        %v1105 = vshrl.u32 %v1097, 16
        %v1106 = vshrl.u32 %v1098, 16
        %v1107 = vshrl.u32 %v1099, 16
        %v1108 = vshrl.u32 %v1100, 16
        %v1109 = vshrl.u32 %v1101, 16
        %v1118 = vshrl.u32 %v1054, 16
        %v1119 = vshrl.u32 %v1055, 16
        %v1120 = vshrl.u32 %v1056, 16
        %v1121 = vshrl.u32 %v1057, 16
        %v1122 = vshrl.u32 %v1058, 16
        %v1123 = vshrl.u32 %v1059, 16
        %v1124 = vshrl.u32 %v1060, 16
        %v1125 = vshrl.u32 %v1061, 16
        %v1126 = vand.u32 %v1118, 1
        %v1127 = vand.u32 %v1119, 1
        %v1128 = vand.u32 %v1120, 1
        %v1129 = vand.u32 %v1121, 1
        %v1130 = vand.u32 %v1122, 1
        %v1131 = vand.u32 %v1123, 1
        %v1132 = vand.u32 %v1124, 1
        %v1133 = vand.u32 %v1125, 1
        %v1134 = vadd.s32 %v1054, 32767
        %v1135 = vadd.s32 %v1055, 32767
        %v1136 = vadd.s32 %v1056, 32767
        %v1137 = vadd.s32 %v1057, 32767
        %v1138 = vadd.s32 %v1058, 32767
        %v1139 = vadd.s32 %v1059, 32767
        %v1140 = vadd.s32 %v1060, 32767
        %v1141 = vadd.s32 %v1061, 32767
        %v1142 = vadd.s32 %v1134, %v1126
        %v1143 = vadd.s32 %v1135, %v1127
        %v1144 = vadd.s32 %v1136, %v1128
        %v1145 = vadd.s32 %v1137, %v1129
        %v1146 = vadd.s32 %v1138, %v1130
        %v1147 = vadd.s32 %v1139, %v1131
        %v1148 = vadd.s32 %v1140, %v1132
        %v1149 = vadd.s32 %v1141, %v1133
        %v1150 = vshrl.u32 %v1142, 16
        %v1151 = vshrl.u32 %v1143, 16
        %v1152 = vshrl.u32 %v1144, 16
        %v1153 = vshrl.u32 %v1145, 16
        %v1154 = vshrl.u32 %v1146, 16
        %v1155 = vshrl.u32 %v1147, 16
        %v1156 = vshrl.u32 %v1148, 16
        %v1157 = vshrl.u32 %v1149, 16
        %v1158 = vshll.u32 %v1150, 16
        %v1159 = vshll.u32 %v1151, 16
        %v1160 = vshll.u32 %v1152, 16
        %v1161 = vshll.u32 %v1153, 16
        %v1162 = vshll.u32 %v1154, 16
        %v1163 = vshll.u32 %v1155, 16
        %v1164 = vshll.u32 %v1156, 16
        %v1165 = vshll.u32 %v1157, 16
        %v1166 = vor.u32 %v1102, %v1158
        %v1167 = vor.u32 %v1103, %v1159
        %v1168 = vor.u32 %v1104, %v1160
        %v1169 = vor.u32 %v1105, %v1161
        %v1170 = vor.u32 %v1106, %v1162
        %v1171 = vor.u32 %v1107, %v1163
        %v1172 = vor.u32 %v1108, %v1164
        %v1173 = vor.u32 %v1109, %v1165
        %1174 = vst [vmem:[%s390] sm:$0xff] %v1166
        %1175 = vst [vmem:[%s390 + $0x8] sm:$0xff] %v1167
        %1176 = vst [vmem:[%s390 + $0x10] sm:$0xff] %v1168
        %1177 = vst [vmem:[%s390 + $0x18] sm:$0xff] %v1169
        %1178 = vst [vmem:[%s390 + $0x20] sm:$0xff] %v1170
        %1179 = vst [vmem:[%s390 + $0x28] sm:$0xff] %v1171
        %1180 = vst [vmem:[%s390 + $0x30] sm:$0xff] %v1172
        %1181 = vst [vmem:[%s390 + $0x38] sm:$0xff] %v1173
        %s1182 = sand.u32 %s234, 1
        %s1183 = scalar_lea.sflag [#allocation4], %s1182
        %s1184 = sand.u32 %s234, 1
        %s1185 = smul.addr %s1184, 64
        %s1186 = scalar_lea.vmem [#allocation7], %s1185
        // Predicated region
        $region61: #{tpu_custom_call.1} parent=51 // pred_check
          %p1187 = pneg %p244
        $region62: #{tpu_custom_call.1} parent=51 // pred_check_branch
          %1189 = sbr.rel (%p1187) target = $region64
        $region63: #{tpu_custom_call.1} parent=51 // pred_region
          %1191 = vsyncadd %s1183, 0
          %s1192 = smul.addr %s32, 32
          %s1193 = sadd.s32 %s33, %s1192
          %s1194 = smul.addr %s1193, 8
          %s1195 = scalar_lea.hbm %s8, %s1194
          %s1196 = sshll.u32 %s1186, 4
          %s1197 = int_to_ptr.vmem [resolvable:$true] %s1196
          %s1198 = sshll.u32 %s1195, 4
          %s1199 = int_to_ptr.hbm [resolvable:$true] %s1198
          %1204 = dma.vmem_to_hbm [thread:$0]  %s1197, 1024, %s1199, %s1183, 128, 512, 8
        $region64: #{tpu_custom_call.1} parent=51 // pred_fallthru
          _
      $region52: #{tpu_custom_call.1} parent=5 // pred_fallthru
        _
      %p1205 = scmp.le.s32.totalorder 2, %s23
      // Predicated region
      $region65: #{tpu_custom_call.1} parent=5 // pred_check
        %p1206 = pneg %p1205
      $region66: #{tpu_custom_call.1} parent=5 // pred_check_branch
        %1208 = sbr.rel (%p1206) target = $region68
      $region67: #{tpu_custom_call.1} parent=5 // pred_region
        %s1209 = ssub.s32 %s23, 2
        // Predicated region
        $region69: #{tpu_custom_call.1} parent=67 // pred_check
          %p1210 = pneg %p250
        $region70: #{tpu_custom_call.1} parent=67 // pred_check_branch
          %1212 = sbr.rel (%p1210) target = $region72
        $region71: #{tpu_custom_call.1} parent=67 // pred_region
          %s1213 = sand.u32 %s235, 1
          %s1214 = scalar_lea.sflag [#allocation4], %s1213
          %s1215 = sand.u32 %s235, 1
          %s1216 = smul.addr %s1215, 64
          %s1217 = scalar_lea.vmem [#allocation7], %s1216
          %1219 = dma.done %s1214, 1024
        $region72: #{tpu_custom_call.1} parent=67 // pred_fallthru
          _
      $region68: #{tpu_custom_call.1} parent=5 // pred_fallthru
        _
    $region6: #{tpu_custom_call.1} parent=1 // loop_footer
      %s27 = sadd.s32 1, %s23
    $region7: #{tpu_custom_call.1} parent=1 // loop_footer_branch
      %22 = sbr.rel target = $region3
    $region8: #{tpu_custom_call.1} parent=1 // loop_exit
      _
    %1220 = vsyncpa [#allocation3], 1
    %s1221 = scalar_lea.sflag [#allocation3], 1
    %1222 = vsyncpa %s1221, 1
    %1223 = vsyncpa [#allocation6], 1
    %s1224 = scalar_lea.sflag [#allocation6], 1
    %1225 = vsyncpa %s1224, 1
    %1226 = vsyncpa [#allocation4], 1
    %s1227 = scalar_lea.sflag [#allocation4], 1
    %1228 = vsyncpa %s1227, 1

</llo_original>
